<compile_context>
chip_gen: v7x
topology: tpu7x:2x2x1
jax: 0.10.0
libtpu: 0.0.40
codegen_flags: <defaults>
</compile_context>

<pallas_src>
import jax
import jax.numpy as jnp
from jax.experimental import pallas as pl
from jax.experimental.pallas import tpu as pltpu

LOG_SIG_MAX = 2.0
LOG_SIG_MIN = -10.0
HALF_LOG_2PI = 0.9189385332046727   # 0.5 * ln(2*pi)
LOG_2 = 0.6931471805599453          # ln(2)


def _make_kernel(action_size, deterministic, with_log_pi):
    A = action_size

    def compute(x, eps):
        # x: (2A, TB) f32, batch on the lane axis.
        mu = x[:A, :]
        log_sigma = jnp.clip(x[A:, :], LOG_SIG_MIN, LOG_SIG_MAX)
        if deterministic:
            z = mu
            # eps == 0  =>  per-element normal log-prob = -log_sigma - 0.5*log(2*pi)
            log_prob_el = -log_sigma - HALF_LOG_2PI
        else:
            sigma = jnp.exp(log_sigma)
            z = mu + sigma * eps
            # (z - mu) / sigma == eps exactly by construction -> no divide.
            log_prob_el = -0.5 * eps * eps - log_sigma - HALF_LOG_2PI
        action = jnp.tanh(z)
        if not with_log_pi:
            return action, None
        # Tanh log-det-Jacobian, numerically stable softplus form:
        #   2 * (log 2 + z - log1p(exp(2 z)))
        two_z = 2.0 * z
        softplus_2z = jnp.maximum(two_z, 0.0) + jnp.log1p(jnp.exp(-jnp.abs(two_z)))
        log_det_j_el = 2.0 * (LOG_2 + z - softplus_2z)
        # Per-sample reduction is a cheap sublane reduce -> (1, TB) lane-dense.
        log_pi = jnp.sum(log_prob_el - log_det_j_el, axis=0, keepdims=True)
        return action, log_pi

    if deterministic:
        if with_log_pi:
            def kernel(x_ref, action_ref, logpi_ref):
                a, lp = compute(x_ref[...].astype(jnp.float32), None)
                action_ref[...] = a.astype(action_ref.dtype)
                logpi_ref[...] = lp
        else:
            def kernel(x_ref, action_ref):
                a, _ = compute(x_ref[...].astype(jnp.float32), None)
                action_ref[...] = a.astype(action_ref.dtype)
    else:
        if with_log_pi:
            def kernel(x_ref, eps_ref, action_ref, logpi_ref):
                a, lp = compute(x_ref[...].astype(jnp.float32),
                                eps_ref[...].astype(jnp.float32))
                action_ref[...] = a.astype(action_ref.dtype)
                logpi_ref[...] = lp
        else:
            def kernel(x_ref, eps_ref, action_ref):
                a, _ = compute(x_ref[...].astype(jnp.float32),
                               eps_ref[...].astype(jnp.float32))
                action_ref[...] = a.astype(action_ref.dtype)
    return kernel


def _pick_batch_tile(B, col_bytes, block_rows):
    """Lane-axis (batch) tile size: multiple of 128 unless one block covers B."""
    if B <= block_rows:
        # Split into two clean 128-lane tiles when large enough, so the
        # "parallel" grid axis can shard across both v7x TensorCores.
        if B > 512 and B % 256 == 0:
            return B // 2, 2
        return B, 1
    tb = max(128, (block_rows // 128) * 128)
    # Keep double-buffered streams comfortably under v7x's 32 MiB scoped VMEM.
    vmem_budget = 24 * 1024 * 1024
    max_tb = max(128, (vmem_budget // (2 * col_bytes)) // 128 * 128)
    tb = min(tb, max_tb)
    return tb, pl.cdiv(B, tb)


def gauss_policy_forward(inputs, rng_key=None, eps=None, with_log_pi=True,
                         deterministic=False, block_rows=1024):
    """JAX/Pallas equivalent of GaussPolicy(squashing_fn=Tanh).forward.

    inputs: [B, 2*A] = (mu | log_sigma), any float dtype.
    eps (optional): [A, B] standard normals for the stochastic path; generated
    from rng_key if omitted (so the sample can be reproduced for testing).
    """
    B, C = inputs.shape
    A = C // 2
    in_dtype = inputs.dtype

    # Batch on the 128-lane axis: [2A, B] input view, [A, B] action output
    # (layout plumbing only; the kernel math is unchanged).
    x_t = inputs.T

    call_args = [x_t]
    if not deterministic:
        if eps is None:
            if rng_key is None:
                rng_key = jax.random.PRNGKey(0)
            eps = jax.random.normal(rng_key, (A, B), jnp.float32)
        call_args.append(eps)

    # Bytes of VMEM per batch column (input + eps + action [+ log_pi]).
    col_bytes = 2 * A * in_dtype.itemsize + A * in_dtype.itemsize
    if not deterministic:
        col_bytes += A * 4
    if with_log_pi:
        col_bytes += 4
    TB, num_tiles = _pick_batch_tile(B, col_bytes, block_rows)

    in_specs = [pl.BlockSpec((2 * A, TB), lambda i: (0, i))]
    if not deterministic:
        in_specs.append(pl.BlockSpec((A, TB), lambda i: (0, i)))

    out_shapes = [jax.ShapeDtypeStruct((A, B), in_dtype)]
    out_specs = [pl.BlockSpec((A, TB), lambda i: (0, i))]
    if with_log_pi:
        out_shapes.append(jax.ShapeDtypeStruct((1, B), jnp.float32))
        out_specs.append(pl.BlockSpec((1, TB), lambda i: (0, i)))

    n_el = B * A
    n_transc = n_el * ((0 if deterministic else 1) + 1 + (2 if with_log_pi else 0))
    bytes_accessed = sum(int(a.size) * a.dtype.itemsize for a in call_args)
    bytes_accessed += sum(s.shape[0] * s.shape[1] * s.dtype.itemsize
                          for s in out_shapes)
    cost = pl.CostEstimate(flops=12 * n_el, transcendentals=n_transc,
                           bytes_accessed=bytes_accessed)

    kernel = _make_kernel(A, deterministic, with_log_pi)

    outs = pl.pallas_call(
        kernel,
        out_shape=tuple(out_shapes),
        grid_spec=pltpu.PrefetchScalarGridSpec(
            num_scalar_prefetch=0,
            grid=(num_tiles,),
            in_specs=in_specs,
            out_specs=tuple(out_specs),
        ),
        compiler_params=pltpu.CompilerParams(
            dimension_semantics=("parallel",)),
        cost_estimate=cost,
    )(*call_args)

    action = outs[0].T                      # [B, A]
    if with_log_pi:
        return action, outs[1][0]           # log_pi: [B]
    return action


def _reference(inputs, eps=None, deterministic=False):
    """Pure-JAX reference mirroring the PyTorch module (eps is [A, B])."""
    A = inputs.shape[1] // 2
    mu = inputs[:, :A]
    log_sigma = jnp.clip(inputs[:, A:], LOG_SIG_MIN, LOG_SIG_MAX)
    sigma = jnp.exp(log_sigma)
    z = mu if deterministic else mu + sigma * eps.T
    log_pi = jnp.sum(-0.5 * ((z - mu) / sigma) ** 2 - log_sigma - HALF_LOG_2PI,
                     axis=-1)
    two_z = 2.0 * z
    sp = jnp.maximum(two_z, 0.0) + jnp.log1p(jnp.exp(-jnp.abs(two_z)))
    ldj = jnp.sum(2.0 * (LOG_2 + z - sp), axis=-1)
    return jnp.tanh(z), log_pi - ldj


if __name__ == "__main__":
    B, A = 16, 16                          # inputs: [B, 2*A]
    key = jax.random.PRNGKey(0)
    k_in, k_eps, k_in2, k_eps2 = jax.random.split(key, 4)
    inputs = 0.5 * jax.random.normal(k_in, (B, 2 * A), jnp.float32)
    eps = jax.random.normal(k_eps, (A, B), jnp.float32)

    # Stochastic path (eps passed explicitly so it can be checked exactly).
    action, log_pi = gauss_policy_forward(inputs, eps=eps)
    jax.block_until_ready((action, log_pi))
    ref_action, ref_log_pi = _reference(inputs, eps)
    assert action.shape == (B, A) and log_pi.shape == (B,)
    assert jnp.allclose(action, ref_action, atol=1e-5, rtol=1e-5)
    assert jnp.allclose(log_pi, ref_log_pi, atol=1e-4, rtol=1e-4)
    assert bool(jnp.all(jnp.abs(action) < 1.0))

    # Stochastic, key-seeded, action-only path (specialized kernel).
    a_only = gauss_policy_forward(inputs, rng_key=jax.random.PRNGKey(7),
                                  with_log_pi=False)
    jax.block_until_ready(a_only)
    assert a_only.shape == (B, A)
    assert bool(jnp.all(jnp.abs(a_only) < 1.0))

    # Deterministic path (z = mu).
    a_det, lp_det = gauss_policy_forward(inputs, deterministic=True)
    jax.block_until_ready((a_det, lp_det))
    r_a_det, r_lp_det = _reference(inputs, deterministic=True)
    assert jnp.allclose(a_det, r_a_det, atol=1e-5, rtol=1e-5)
    assert jnp.allclose(lp_det, r_lp_det, atol=1e-4, rtol=1e-4)

    # Multi-tile grid with a ragged final block (no wrapper-side padding).
    B2 = 200
    inputs2 = 0.5 * jax.random.normal(k_in2, (B2, 2 * A), jnp.float32)
    eps2 = jax.random.normal(k_eps2, (A, B2), jnp.float32)
    a2, lp2 = gauss_policy_forward(inputs2, eps=eps2, block_rows=128)
    jax.block_until_ready((a2, lp2))
    r_a2, r_lp2 = _reference(inputs2, eps2)
    assert a2.shape == (B2, A) and lp2.shape == (B2,)
    assert jnp.allclose(a2, r_a2, atol=1e-5, rtol=1e-5)
    assert jnp.allclose(lp2, r_lp2, atol=1e-4, rtol=1e-4)

    print("KERNEL_OK")
</pallas_src>

<mosaic_0001>
module attributes {stable_mosaic.version = 11 : i64} {
  func.func @kernel(%arg0: i32, %arg1: memref<32x16xf32, #tpu.memory_space<vmem>>, %arg2: memref<16x16xf32, #tpu.memory_space<vmem>>, %arg3: memref<16x16xf32, #tpu.memory_space<vmem>>, %arg4: memref<1x16xf32, #tpu.memory_space<vmem>>) attributes {dimension_semantics = [#tpu.dimension_semantics<parallel>], iteration_bounds = array<i64: 1>, scalar_prefetch = 0 : i64, scratch_operands = 0 : i64, tpu.core_type = #tpu.core_type<tc>, window_params = [{transform_indices = @transform_0, window_bounds = array<i64: 32, 16>}, {transform_indices = @transform_1, window_bounds = array<i64: 16, 16>}, {transform_indices = @transform_2, window_bounds = array<i64: 16, 16>}, {transform_indices = @transform_3, window_bounds = array<i64: 1, 16>}]} {
    %c0 = arith.constant 0 : index
    %c0_0 = arith.constant 0 : index
    %0 = vector.load %arg1[%c0, %c0_0] : memref<32x16xf32, #tpu.memory_space<vmem>>, vector<32x16xf32>
    %c0_1 = arith.constant 0 : index
    %c0_2 = arith.constant 0 : index
    %1 = vector.load %arg2[%c0_1, %c0_2] : memref<16x16xf32, #tpu.memory_space<vmem>>, vector<16x16xf32>
    %2 = vector.extract_strided_slice %0 {offsets = [0, 0], sizes = [16, 16], strides = [1, 1]} : vector<32x16xf32> to vector<16x16xf32>
    %3 = vector.extract_strided_slice %0 {offsets = [16, 0], sizes = [16, 16], strides = [1, 1]} : vector<32x16xf32> to vector<16x16xf32>
    %cst = arith.constant -1.000000e+01 : f32
    %cst_3 = arith.constant 2.000000e+00 : f32
    %4 = vector.broadcast %cst : f32 to vector<16x16xf32>
    %5 = arith.maximumf %4, %3 : vector<16x16xf32>
    %6 = vector.broadcast %cst_3 : f32 to vector<16x16xf32>
    %7 = arith.minimumf %6, %5 : vector<16x16xf32>
    %8 = math.exp %7 : vector<16x16xf32>
    %9 = arith.mulf %8, %1 : vector<16x16xf32>
    %10 = arith.addf %2, %9 : vector<16x16xf32>
    %cst_4 = arith.constant -5.000000e-01 : f32
    %11 = vector.broadcast %cst_4 : f32 to vector<16x16xf32>
    %12 = arith.mulf %11, %1 : vector<16x16xf32>
    %13 = arith.mulf %12, %1 : vector<16x16xf32>
    %14 = arith.subf %13, %7 : vector<16x16xf32>
    %cst_5 = arith.constant 0.918938517 : f32
    %15 = vector.broadcast %cst_5 : f32 to vector<16x16xf32>
    %16 = arith.subf %14, %15 : vector<16x16xf32>
    %17 = math.tanh %10 : vector<16x16xf32>
    %cst_6 = arith.constant 2.000000e+00 : f32
    %18 = vector.broadcast %cst_6 : f32 to vector<16x16xf32>
    %19 = arith.mulf %18, %10 : vector<16x16xf32>
    %cst_7 = arith.constant 0.000000e+00 : f32
    %20 = vector.broadcast %cst_7 : f32 to vector<16x16xf32>
    %21 = arith.maximumf %19, %20 : vector<16x16xf32>
    %22 = math.absf %19 : vector<16x16xf32>
    %cst_8 = arith.constant 0.000000e+00 : f32
    %23 = vector.broadcast %cst_8 : f32 to vector<16x16xf32>
    %24 = arith.subf %23, %22 : vector<16x16xf32>
    %25 = math.exp %24 : vector<16x16xf32>
    %26 = math.log1p %25 : vector<16x16xf32>
    %27 = arith.addf %21, %26 : vector<16x16xf32>
    %cst_9 = arith.constant 0.693147182 : f32
    %28 = vector.broadcast %cst_9 : f32 to vector<16x16xf32>
    %29 = arith.addf %28, %10 : vector<16x16xf32>
    %30 = arith.subf %29, %27 : vector<16x16xf32>
    %cst_10 = arith.constant 2.000000e+00 : f32
    %31 = vector.broadcast %cst_10 : f32 to vector<16x16xf32>
    %32 = arith.mulf %31, %30 : vector<16x16xf32>
    %33 = arith.subf %16, %32 : vector<16x16xf32>
    %cst_11 = arith.constant dense<0.000000e+00> : vector<16xf32>
    %34 = vector.multi_reduction <add>, %33, %cst_11 [0] : vector<16x16xf32> to vector<16xf32>
    %35 = vector.shape_cast %34 : vector<16xf32> to vector<1x16xf32>
    %c0_12 = arith.constant 0 : index
    %c0_13 = arith.constant 0 : index
    %36 = vector.load %arg3[%c0_12, %c0_13] : memref<16x16xf32, #tpu.memory_space<vmem>>, vector<16x16xf32>
    tpu.vector_store %arg3[%c0_12, %c0_13], %17 {strides = array<i32>} : memref<16x16xf32, #tpu.memory_space<vmem>>, vector<16x16xf32>,
    %c0_14 = arith.constant 0 : index
    %c0_15 = arith.constant 0 : index
    %37 = vector.load %arg4[%c0_14, %c0_15] : memref<1x16xf32, #tpu.memory_space<vmem>>, vector<1x16xf32>
    tpu.vector_store %arg4[%c0_14, %c0_15], %35 {strides = array<i32>} : memref<1x16xf32, #tpu.memory_space<vmem>>, vector<1x16xf32>,
    return
  }
  func.func @transform_0(%arg0: i32) -> (i32, i32) {
    %c0_i32 = arith.constant 0 : i32
    %c0_i32_0 = arith.constant 0 : i32
    return %c0_i32, %arg0 : i32, i32
  }
  func.func @transform_1(%arg0: i32) -> (i32, i32) {
    %c0_i32 = arith.constant 0 : i32
    %c0_i32_0 = arith.constant 0 : i32
    return %c0_i32, %arg0 : i32, i32
  }
  func.func @transform_2(%arg0: i32) -> (i32, i32) {
    %c0_i32 = arith.constant 0 : i32
    %c0_i32_0 = arith.constant 0 : i32
    return %c0_i32, %arg0 : i32, i32
  }
  func.func @transform_3(%arg0: i32) -> (i32, i32) {
    %c0_i32 = arith.constant 0 : i32
    %c0_i32_0 = arith.constant 0 : i32
    return %c0_i32, %arg0 : i32, i32
  }
}

</mosaic_0001>

<llo_original>
// kernel: tpu_custom_call.1
$region0: #{tpu_custom_call.1}
  #allocation0 [shape = 'u32[]', space=smem, size = 0x4, offset = 0x4, fixed_abs, tag = 'smem constant byte address 0x4 - core index']
  #allocation1 [shape = 'u32[144,128]{1,0:T(1,128)}', space=vmem, size = 0x12000, scoped, tag = 'internal scratch']
  %s0 = inlined_call_operand.vmem [shape: f32[32,16], index: 0, kind: input, shape index: {}]
  %s1 = inlined_call_operand.vmem [shape: f32[16,16], index: 1, kind: input, shape index: {}]
  %s2 = inlined_call_operand.hbm [shape: f32[16,16], index: 2, kind: output, shape index: {0}]
  %s3 = inlined_call_operand.hbm [shape: f32[1,16], index: 3, kind: output, shape index: {1}]
  %4 = xla_tuple %s2, %s3
  %s5 = sld [smem:[#allocation0]]
  $region26: #{tpu_custom_call.1} parent=0
    _
  %s7 = ssub.s32 1, %s5
  %s8 = scalar_select 0, %s7, %s5
  $region1: #{tpu_custom_call.1} parent=0
    #allocation2 [shape = 'u8[8192]{0}', space=vmem, size = 0x2000, scoped, tag = 'output window, operand 0, single buffered']
    #allocation3 [shape = 's32[1]{0}', space=sflag, size = 0x4, scoped, tag = 'scoped memory for tpu_custom_call.1']
    #allocation4 [shape = 'u8[512]{0}', space=vmem, size = 0x400, scoped, tag = 'output window, operand 1, single buffered']
    #allocation5 [shape = 's32[1]{0}', space=sflag, size = 0x4, scoped, tag = 'scoped memory for tpu_custom_call.1']
    %9 = vsyncpa [#allocation3], 0
    %10 = vsyncpa [#allocation5], 0
    // Predicated region
    $region2: #{tpu_custom_call.1} parent=1 // pred_check
      _
    $region3: #{tpu_custom_call.1} parent=1 // pred_check_branch
      %12 = sbr.rel (0) target = $region5
    $region4: #{tpu_custom_call.1} parent=1 // pred_region
      _
    $region5: #{tpu_custom_call.1} parent=1 // pred_fallthru
      _
    // Predicated region
    $region6: #{tpu_custom_call.1} parent=1 // pred_check
      _
    $region7: #{tpu_custom_call.1} parent=1 // pred_check_branch
      %14 = sbr.rel (0) target = $region9
    $region8: #{tpu_custom_call.1} parent=1 // pred_region
      _
    $region9: #{tpu_custom_call.1} parent=1 // pred_fallthru
      _
    %v15 = vld [vmem:[%s0] sm:$0xff]
    %v16 = vld [vmem:[%s0 + $0x8] sm:$0xff]
    %v17 = vld [vmem:[%s0 + $0x10] sm:$0xff]
    %v18 = vld [vmem:[%s0 + $0x18] sm:$0xff]
    %v19 = vld [vmem:[%s1] sm:$0xff]
    %v20 = vld [vmem:[%s1 + $0x8] sm:$0xff]
    %v21 = vmax.f32 %v17, -10.0
    %v22 = vmax.f32 %v18, -10.0
    %v23 = vmin.f32 %v21, 2.0
    %v24 = vmin.f32 %v22, 2.0
    %v25 = vmul.f32 %v23, 1.442695
    %v26 = vpow.pop %v25
    %v27 = vmul.f32 %v24, 1.442695
    %v28 = vpow.pop %v27
    %v29 = vmul.f32 %v26, %v19
    %v30 = vmul.f32 %v28, %v20
    %v31 = vadd.f32 %v15, %v29
    %v32 = vadd.f32 %v16, %v30
    %v33 = vmul.f32 %v19, -0.5
    %v34 = vmul.f32 %v20, -0.5
    %v35 = vmul.f32 %v33, %v19
    %v36 = vmul.f32 %v34, %v20
    %v37 = vsub.f32 %v35, %v23
    %v38 = vsub.f32 %v36, %v24
    %v39 = vsub.f32 %v37, 0.9189385
    %v40 = vsub.f32 %v38, 0.9189385
    %v41 = vtanh.pop %v31
    %v42 = vtanh.pop %v32
    %v43 = vmul.f32 %v31, 2.0
    %v44 = vmul.f32 %v32, 2.0
    %v45 = vmax.f32 %v43, 0.0
    %v46 = vmax.f32 %v44, 0.0
    %v47 = vand.u32 2147483647, %v43
    %v48 = vand.u32 2147483647, %v44
    %v49 = vsub.f32 0.0, %v47
    %v50 = vsub.f32 0.0, %v48
    %v51 = vmul.f32 %v49, 1.442695
    %v52 = vpow.pop %v51
    %v53 = vmul.f32 %v50, 1.442695
    %v54 = vpow.pop %v53
    %v55 = vadd.f32 %v52, 1.0
    %v56 = vlog2.pop %v55
    %v57 = vmul.f32 %v56, 0.6931472
    %v58 = vmul.f32 -0.5, %v52
    %v59 = vadd.f32 %v58, 1.0
    %v60 = vmul.f32 %v59, %v52
    %v61 = vand.u32 2147483647, %v52
    %vm62 = vcmp.lt.f32.partialorder %v61, 0.0004427343
    %v63 = vsel %vm62, %v60, %v57
    %v64 = vadd.f32 %v54, 1.0
    %v65 = vlog2.pop %v64
    %v66 = vmul.f32 %v65, 0.6931472
    %v67 = vmul.f32 -0.5, %v54
    %v68 = vadd.f32 %v67, 1.0
    %v69 = vmul.f32 %v68, %v54
    %v70 = vand.u32 2147483647, %v54
    %vm71 = vcmp.lt.f32.partialorder %v70, 0.0004427343
    %v72 = vsel %vm71, %v69, %v66
    %v73 = vadd.f32 %v45, %v63
    %v74 = vadd.f32 %v46, %v72
    %v75 = vadd.f32 %v31, 0.6931472
    %v76 = vadd.f32 %v32, 0.6931472
    %v77 = vsub.f32 %v75, %v73
    %v78 = vsub.f32 %v76, %v74
    %v79 = vmul.f32 %v77, 2.0
    %v80 = vmul.f32 %v78, 2.0
    %v81 = vsub.f32 %v39, %v79
    %v82 = vsub.f32 %v40, %v80
    %vm83 = vcmask 130048
    %v84 = vsel %vm83, %v81, 0.0
    %v85 = vsel %vm83, %v82, 0.0
    %v86 = vadd.f32 %v84, %v85
    %v87 = vrot.slane %v86, 4
    %v88 = vadd.f32 %v86, %v87
    %v89 = vrot.slane %v88, 2
    %v90 = vadd.f32 %v88, %v89
    %v91 = vrot.slane %v90, 1
    %v92 = vadd.f32 %v90, %v91
    %93 = vst.msk [vmem:[#allocation2] sm:$0xff] %vm83, %v41
    %94 = vst.msk [vmem:[#allocation2 + $0x8] sm:$0xff] %vm83, %v42
    %vm95 = vcmask 122880
    %96 = vst.msk [vmem:[#allocation4] sm:$0x1] %vm95, %v92
    // Predicated region
    $region10: #{tpu_custom_call.1} parent=1 // pred_check
      _
    $region11: #{tpu_custom_call.1} parent=1 // pred_check_branch
      %98 = sbr.rel (0) target = $region13
    $region12: #{tpu_custom_call.1} parent=1 // pred_region
      %s100 = ssub.s32 256, 256
      %101 = vsyncadd [#allocation3], %s100
      %s102 = sshll.u32 [#allocation2], 4
      %s103 = int_to_ptr.vmem [resolvable:$true] %s102
      %108 = dma.vmem_to_hbm [thread:$0]  %s103, 256, %s2, [#allocation3], 128, 128, 8
    $region13: #{tpu_custom_call.1} parent=1 // pred_fallthru
      _
    // Predicated region
    $region14: #{tpu_custom_call.1} parent=1 // pred_check
      _
    $region15: #{tpu_custom_call.1} parent=1 // pred_check_branch
      %110 = sbr.rel (0) target = $region17
    $region16: #{tpu_custom_call.1} parent=1 // pred_region
      %s112 = ssub.s32 16, 16
      %113 = vsyncadd [#allocation5], %s112
      %s115 = sshll.u32 [#allocation4], 4
      %s116 = int_to_ptr.vmem [resolvable:$true] %s115
      %118 = dma.vmem_to_hbm [thread:$0]  %s116, 16, %s3, [#allocation5]
    $region17: #{tpu_custom_call.1} parent=1 // pred_fallthru
      _
    // Predicated region
    $region18: #{tpu_custom_call.1} parent=1 // pred_check
      _
    $region19: #{tpu_custom_call.1} parent=1 // pred_check_branch
      %120 = sbr.rel (0) target = $region21
    $region20: #{tpu_custom_call.1} parent=1 // pred_region
      %121 = dma.done [#allocation3], 256
    $region21: #{tpu_custom_call.1} parent=1 // pred_fallthru
      _
    // Predicated region
    $region22: #{tpu_custom_call.1} parent=1 // pred_check
      _
    $region23: #{tpu_custom_call.1} parent=1 // pred_check_branch
      %123 = sbr.rel (0) target = $region25
    $region24: #{tpu_custom_call.1} parent=1 // pred_region
      %124 = dma.done [#allocation5], 16
    $region25: #{tpu_custom_call.1} parent=1 // pred_fallthru
      _
    %125 = vsyncpa [#allocation3], 1
    %126 = vsyncpa [#allocation5], 1

</llo_original>
